<compile_context>
chip_gen: v7x
topology: tpu7x:2x2x1
jax: 0.10.0
libtpu: 0.0.40
codegen_flags: <defaults>
</compile_context>

<pallas_src>
import functools

import jax
import jax.numpy as jnp
from jax.experimental import pallas as pl
from jax.experimental.pallas import tpu as pltpu


def _round_up(n: int, m: int) -> int:
    return ((n + m - 1) // m) * m


# =============================================================================
# Part 1: GlobalEncoder — NHWC -> NCHW permute as a Pallas kernel
# =============================================================================
def _nhwc_to_nchw_kernel(x_ref, o_ref):
    # x_ref block: (Bt, H*W, C); o_ref block: (Bt, C, H*W).
    # Static unroll over the (small, <=8) per-block sample count; each sample
    # is one 2-D XLU transpose. Batching samples per grid step amortizes the
    # ~0.35us per-grid-step overhead that dominated the grid=(B,) version.
    for s in range(x_ref.shape[0]):
        o_ref[s] = x_ref[s].T


def global_encoder_forward(observations, *,
                           block_bytes_target=2 * 1024 * 1024,
                           max_samples_per_block=8):
    """GlobalEncoder.forward: x = semantic_map.permute(0, 3, 1, 2); backbone(x).

    Only the permute is implemented here (ideally this layout change would be
    fused into / absorbed by the backbone's first conv, per review).
    """
    # TODO(synk): self.backbone comes from an injected make_backbone(...) with
    # no definition in the spec — not translated.
    x = observations["global_semantic_map"]            # (B, H, W, C)
    B, H, W, C = x.shape
    x3 = x.reshape(B, H * W, C)                         # contiguous reshape (free)

    per_sample_bytes = H * W * C * int(jnp.dtype(x.dtype).itemsize)
    bt = max(1, min(B, max_samples_per_block,
                    block_bytes_target // max(per_sample_bytes, 1)))

    out3 = pl.pallas_call(
        _nhwc_to_nchw_kernel,
        out_shape=jax.ShapeDtypeStruct((B, C, H * W), x.dtype),
        grid_spec=pltpu.PrefetchScalarGridSpec(
            num_scalar_prefetch=0,
            grid=(pl.cdiv(B, bt),),
            in_specs=[pl.BlockSpec((bt, H * W, C), lambda b: (b, 0, 0))],
            out_specs=pl.BlockSpec((bt, C, H * W), lambda b: (b, 0, 0)),
        ),
        compiler_params=pltpu.CompilerParams(dimension_semantics=("parallel",)),
    )(x3)
    return out3.reshape(B, C, H, W)


# =============================================================================
# Part 2: Gaussian policy head
# =============================================================================
def _gaussian_mu_kernel(x_ref, w_ref, b_ref, mu_ref, *, action_activation):
    # (tb, I) @ (I, O) on the MXU with f32 accumulation; bias broadcast-add and
    # tanh (EUP) in f32; store directly to the unpadded (tb, O) output block.
    mu = jnp.dot(x_ref[...], w_ref[...], preferred_element_type=jnp.float32)
    mu = mu + b_ref[...]
    if action_activation == "tanh":
        mu = jnp.tanh(mu)
    mu_ref[...] = mu.astype(mu_ref.dtype)


def _choose_tb(batch: int, *, target: int, min_tb: int) -> int:
    """Pick a sublane-aligned batch tile with >=2 grid steps for large batches."""
    if batch <= min_tb:
        return batch                       # single full block (legal: full dim)
    num_tiles = max(2, pl.cdiv(batch, target))
    tb = _round_up(pl.cdiv(batch, num_tiles), 8)
    return max(min_tb, tb)


def gaussian_net_forward(x, weight_t, bias, std_param, *,
                         action_activation="tanh",
                         use_log_std=True,
                         use_softplus=False,
                         min_std=-5.0,
                         max_std=2.0,
                         target_block_b=8192,
                         min_block_b=512):
    """Returns (mu, std) — the parameters of CustomNormal(mu, std).

    x: (B, num_inputs); weight_t: (num_inputs, num_outputs) (pre-transposed at
    init); bias: (num_outputs,) or (1, num_outputs); std_param: (num_outputs,).
    For v6e/v7x, x and weight_t may be supplied in bfloat16 (MXU-native, f32
    accumulation is kept) — a numerics decision left to the caller.
    """
    B, num_inputs = x.shape
    num_outputs = weight_t.shape[1]
    assert weight_t.shape == (num_inputs, num_outputs)
    b2 = bias.reshape(1, num_outputs).astype(jnp.float32)   # no-op if prepped at init

    # ---- batch tiling: no padded copy of x; ragged last tile handled by
    # Pallas boundary clipping (OOB rows only feed their own discarded output
    # rows). tb ~ B/2..B/num_tiles keeps >=2 grid steps for large B (v7x
    # megacore + pipelining); double-buffered working set at tb=8192 is
    # ~2.6 MiB — far below every generation's scoped-VMEM default, so no
    # explicit vmem_limit_bytes is needed.
    tb = _choose_tb(B, target=target_block_b, min_tb=min_block_b)
    grid = (pl.cdiv(B, tb),)

    x_item = int(jnp.dtype(x.dtype).itemsize)
    w_item = int(jnp.dtype(weight_t.dtype).itemsize)
    cost = pl.CostEstimate(
        flops=2 * B * num_inputs * num_outputs,
        transcendentals=(B * num_outputs) if action_activation == "tanh" else 0,
        bytes_accessed=int(B * num_inputs * x_item                 # x
                           + num_inputs * num_outputs * w_item     # W
                           + num_outputs * 4                       # bias
                           + B * num_outputs * x_item),            # mu
    )

    mu = pl.pallas_call(
        functools.partial(_gaussian_mu_kernel, action_activation=action_activation),
        out_shape=jax.ShapeDtypeStruct((B, num_outputs), x.dtype),
        grid_spec=pltpu.PrefetchScalarGridSpec(
            num_scalar_prefetch=0,
            grid=grid,
            in_specs=[
                pl.BlockSpec((tb, num_inputs), lambda i: (i, 0)),        # x: batch-tiled
                pl.BlockSpec((num_inputs, num_outputs), lambda i: (0, 0)),  # W: invariant
                pl.BlockSpec((1, num_outputs), lambda i: (0, 0)),        # bias: invariant
            ],
            out_specs=pl.BlockSpec((tb, num_outputs), lambda i: (i, 0)),
        ),
        compiler_params=pltpu.CompilerParams(
            dimension_semantics=("parallel",)),   # shard batch tiles over 2 TCs on v7x
        cost_estimate=cost,
    )(x, weight_t, b2)

    # ---- std path: batch-independent tiny vector, hoisted out of the kernel.
    std = jnp.clip(std_param.astype(jnp.float32), min_std, max_std)
    if use_log_std:
        std = jnp.exp(std)
    if use_softplus:
        std = jnp.logaddexp(std, 0.0)  # softplus(x) = log(1 + e^x)
    return mu, std


# -----------------------------------------------------------------------------
# Deterministic parameter init (mirrors the PyTorch __init__); all layout prep
# (W transpose, f32 (1, O) bias) happens here, off the forward hot path.
# -----------------------------------------------------------------------------
def orthogonal_init(key, rows, cols, gain):
    flat = jax.random.normal(key, (rows, cols), dtype=jnp.float32)
    transposed = rows < cols
    if transposed:
        flat = flat.T
    q, r = jnp.linalg.qr(flat)
    d = jnp.diag(r)
    q = q * jnp.where(d >= 0, 1.0, -1.0)[None, :]   # strictly +/-1 (sign(0)=0 bug fixed)
    if transposed:
        q = q.T
    return gain * q


def make_params(key, num_inputs, num_outputs):
    w = orthogonal_init(key, num_outputs, num_inputs, gain=0.01)   # (O, I)
    weight_t = jnp.asarray(w.T, dtype=jnp.float32)                 # (I, O)
    bias = jnp.zeros((1, num_outputs), dtype=jnp.float32)          # (1, O), kernel-ready
    std_param = jnp.zeros((num_outputs,), dtype=jnp.float32)
    return weight_t, bias, std_param


# -----------------------------------------------------------------------------
# Pure-JAX references
# -----------------------------------------------------------------------------
def reference_head(x, weight_t, bias, std_param, *, action_activation,
                   use_log_std, use_softplus, min_std, max_std):
    mu = x @ weight_t + bias.reshape(1, -1)
    if action_activation == "tanh":
        mu = jnp.tanh(mu)
    std = jnp.clip(std_param.astype(jnp.float32), min_std, max_std)
    if use_log_std:
        std = jnp.exp(std)
    if use_softplus:
        std = jnp.logaddexp(std, 0.0)
    return mu, std


if __name__ == "__main__":
    key = jax.random.PRNGKey(0)
    k_map, k_x, k_w, k_x2 = jax.random.split(key, 4)

    # --- GlobalEncoder permute: small NHWC semantic map ----------------------
    B, H, W, C = 2, 16, 16, 4
    sem_map = jax.random.normal(k_map, (B, H, W, C), dtype=jnp.float32)
    x_nchw = jax.block_until_ready(
        global_encoder_forward({"global_semantic_map": sem_map}))
    perm_ref = jnp.transpose(sem_map, (0, 3, 1, 2))
    assert x_nchw.shape == (B, C, H, W)
    assert jnp.allclose(x_nchw, perm_ref)

    # --- Gaussian policy head -------------------------------------------------
    NUM_INPUTS, NUM_OUTPUTS = 32, 8
    cfg = dict(action_activation="tanh", use_log_std=True, use_softplus=False,
               min_std=-5.0, max_std=2.0)
    weight_t, bias, std_param = make_params(k_w, NUM_INPUTS, NUM_OUTPUTS)

    # small batch (single full-batch block, grid=(1,))
    feats = jax.random.normal(k_x, (B, NUM_INPUTS), dtype=jnp.float32)
    mu, std = gaussian_net_forward(feats, weight_t, bias, std_param, **cfg)
    mu = jax.block_until_ready(mu)
    std = jax.block_until_ready(std)
    mu_ref, std_ref = reference_head(feats, weight_t, bias, std_param, **cfg)
    assert mu.shape == (B, NUM_OUTPUTS)
    assert std.shape == (NUM_OUTPUTS,)
    assert std.dtype == jnp.float32
    assert jnp.allclose(mu, mu_ref, atol=1e-5, rtol=1e-5)
    assert jnp.allclose(std, std_ref, atol=1e-5, rtol=1e-5)

    # larger batch: exercises the multi-tile grid (>=2 steps) with a ragged
    # last tile (B=1000, tb=512 -> grid=(2,), rows 1000..1023 clipped by Pallas)
    B2 = 1000
    feats2 = jax.random.normal(k_x2, (B2, NUM_INPUTS), dtype=jnp.float32)
    mu2, _ = gaussian_net_forward(feats2, weight_t, bias, std_param, **cfg)
    mu2 = jax.block_until_ready(mu2)
    mu2_ref, _ = reference_head(feats2, weight_t, bias, std_param, **cfg)
    assert mu2.shape == (B2, NUM_OUTPUTS)
    assert jnp.allclose(mu2, mu2_ref, atol=1e-5, rtol=1e-5)

    print("KERNEL_OK")
</pallas_src>

<mosaic_0001>
module attributes {stable_mosaic.version = 11 : i64} {
  func.func @_nhwc_to_nchw_kernel(%arg0: i32, %arg1: memref<2x256x4xf32, #tpu.memory_space<vmem>>, %arg2: memref<2x4x256xf32, #tpu.memory_space<vmem>>) attributes {dimension_semantics = [#tpu.dimension_semantics<parallel>], iteration_bounds = array<i64: 1>, scalar_prefetch = 0 : i64, scratch_operands = 0 : i64, tpu.core_type = #tpu.core_type<tc>, window_params = [{transform_indices = @transform_0, window_bounds = array<i64: 2, 256, 4>}, {transform_indices = @transform_1, window_bounds = array<i64: 2, 4, 256>}]} {
    %c0 = arith.constant 0 : index
    %c0_0 = arith.constant 0 : index
    %c0_1 = arith.constant 0 : index
    %0 = vector.load %arg1[%c0, %c0_0, %c0_1] : memref<2x256x4xf32, #tpu.memory_space<vmem>>, vector<1x256x4xf32>
    %1 = vector.shape_cast %0 : vector<1x256x4xf32> to vector<256x4xf32>
    %2 = tpu.transpose %1, [1, 0] : vector<256x4xf32> -> vector<4x256xf32>
    %c0_2 = arith.constant 0 : index
    %c0_3 = arith.constant 0 : index
    %c0_4 = arith.constant 0 : index
    %3 = vector.load %arg2[%c0_2, %c0_3, %c0_4] : memref<2x4x256xf32, #tpu.memory_space<vmem>>, vector<1x4x256xf32>
    %4 = vector.shape_cast %3 : vector<1x4x256xf32> to vector<4x256xf32>
    %5 = vector.shape_cast %2 : vector<4x256xf32> to vector<1x4x256xf32>
    tpu.vector_store %arg2[%c0_2, %c0_3, %c0_4], %5 {strides = array<i32>} : memref<2x4x256xf32, #tpu.memory_space<vmem>>, vector<1x4x256xf32>,
    %c1 = arith.constant 1 : index
    %c0_5 = arith.constant 0 : index
    %c0_6 = arith.constant 0 : index
    %6 = vector.load %arg1[%c1, %c0_5, %c0_6] : memref<2x256x4xf32, #tpu.memory_space<vmem>>, vector<1x256x4xf32>
    %7 = vector.shape_cast %6 : vector<1x256x4xf32> to vector<256x4xf32>
    %8 = tpu.transpose %7, [1, 0] : vector<256x4xf32> -> vector<4x256xf32>
    %c1_7 = arith.constant 1 : index
    %c0_8 = arith.constant 0 : index
    %c0_9 = arith.constant 0 : index
    %9 = vector.load %arg2[%c1_7, %c0_8, %c0_9] : memref<2x4x256xf32, #tpu.memory_space<vmem>>, vector<1x4x256xf32>
    %10 = vector.shape_cast %9 : vector<1x4x256xf32> to vector<4x256xf32>
    %11 = vector.shape_cast %8 : vector<4x256xf32> to vector<1x4x256xf32>
    tpu.vector_store %arg2[%c1_7, %c0_8, %c0_9], %11 {strides = array<i32>} : memref<2x4x256xf32, #tpu.memory_space<vmem>>, vector<1x4x256xf32>,
    return
  }
  func.func @transform_0(%arg0: i32) -> (i32, i32, i32) {
    %c0_i32 = arith.constant 0 : i32
    %c0_i32_0 = arith.constant 0 : i32
    %c0_i32_1 = arith.constant 0 : i32
    return %arg0, %c0_i32, %c0_i32_0 : i32, i32, i32
  }
  func.func @transform_1(%arg0: i32) -> (i32, i32, i32) {
    %c0_i32 = arith.constant 0 : i32
    %c0_i32_0 = arith.constant 0 : i32
    %c0_i32_1 = arith.constant 0 : i32
    return %arg0, %c0_i32, %c0_i32_0 : i32, i32, i32
  }
}

</mosaic_0001>

<llo_original>
// kernel: tpu_custom_call.1
$region0: #{tpu_custom_call.1}
  #allocation0 [shape = 'u32[]', space=smem, size = 0x4, offset = 0x4, fixed_abs, tag = 'smem constant byte address 0x4 - core index']
  #allocation1 [shape = 'u32[144,128]{1,0:T(1,128)}', space=vmem, size = 0x12000, scoped, tag = 'internal scratch']
  %s0 = inlined_call_operand.vmem [shape: f32[2,256,4], index: 0, kind: input, shape index: {}]
  %s1 = inlined_call_operand.hbm [shape: f32[2,4,256], index: 1, kind: output, shape index: {}]
  %s2 = sld [smem:[#allocation0]]
  $region14: #{tpu_custom_call.1} parent=0
    _
  %s4 = ssub.s32 1, %s2
  %s5 = scalar_select 0, %s4, %s2
  $region1: #{tpu_custom_call.1} parent=0
    #allocation2 [shape = 'u8[8192]{0}', space=vmem, size = 0x2000, scoped, tag = 'output window, operand 0, single buffered']
    #allocation3 [shape = 's32[1]{0}', space=sflag, size = 0x4, scoped, tag = 'scoped memory for tpu_custom_call.1']
    %6 = vsyncpa [#allocation3], 0
    // Predicated region
    $region2: #{tpu_custom_call.1} parent=1 // pred_check
      _
    $region3: #{tpu_custom_call.1} parent=1 // pred_check_branch
      %8 = sbr.rel (0) target = $region5
    $region4: #{tpu_custom_call.1} parent=1 // pred_region
      _
    $region5: #{tpu_custom_call.1} parent=1 // pred_fallthru
      _
    %v9 = vld [vmem:[%s0] sm:$0xff]
    %v10 = vld [vmem:[%s0 + $0x8] sm:$0xff]
    %v11 = vld [vmem:[%s0 + $0x10] sm:$0xff]
    %v12 = vld [vmem:[%s0 + $0x18] sm:$0xff]
    %v13 = vld [vmem:[%s0 + $0x20] sm:$0xff]
    %v14 = vld [vmem:[%s0 + $0x28] sm:$0xff]
    %v15 = vld [vmem:[%s0 + $0x30] sm:$0xff]
    %v16 = vld [vmem:[%s0 + $0x38] sm:$0xff]
    %v17 = vld [vmem:[%s0 + $0x40] sm:$0xff]
    %v18 = vld [vmem:[%s0 + $0x48] sm:$0xff]
    %v19 = vld [vmem:[%s0 + $0x50] sm:$0xff]
    %v20 = vld [vmem:[%s0 + $0x58] sm:$0xff]
    %v21 = vld [vmem:[%s0 + $0x60] sm:$0xff]
    %v22 = vld [vmem:[%s0 + $0x68] sm:$0xff]
    %v23 = vld [vmem:[%s0 + $0x70] sm:$0xff]
    %v24 = vld [vmem:[%s0 + $0x78] sm:$0xff]
    %v25 = vld [vmem:[%s0 + $0x80] sm:$0xff]
    %v26 = vld [vmem:[%s0 + $0x88] sm:$0xff]
    %v27 = vld [vmem:[%s0 + $0x90] sm:$0xff]
    %v28 = vld [vmem:[%s0 + $0x98] sm:$0xff]
    %v29 = vld [vmem:[%s0 + $0xa0] sm:$0xff]
    %v30 = vld [vmem:[%s0 + $0xa8] sm:$0xff]
    %v31 = vld [vmem:[%s0 + $0xb0] sm:$0xff]
    %v32 = vld [vmem:[%s0 + $0xb8] sm:$0xff]
    %v33 = vld [vmem:[%s0 + $0xc0] sm:$0xff]
    %v34 = vld [vmem:[%s0 + $0xc8] sm:$0xff]
    %v35 = vld [vmem:[%s0 + $0xd0] sm:$0xff]
    %v36 = vld [vmem:[%s0 + $0xd8] sm:$0xff]
    %v37 = vld [vmem:[%s0 + $0xe0] sm:$0xff]
    %v38 = vld [vmem:[%s0 + $0xe8] sm:$0xff]
    %v39 = vld [vmem:[%s0 + $0xf0] sm:$0xff]
    %v40 = vld [vmem:[%s0 + $0xf8] sm:$0xff]
    %41 = vxpose.xlu0.b32.start [1/16] %v9, 128
    %42 = vxpose.xlu0.b32.cont [2/16] %v10, 128
    %43 = vxpose.xlu0.b32.cont [3/16] %v11, 128
    %44 = vxpose.xlu0.b32.cont [4/16] %v12, 128
    %45 = vxpose.xlu0.b32.cont [5/16] %v13, 128
    %46 = vxpose.xlu0.b32.cont [6/16] %v14, 128
    %47 = vxpose.xlu0.b32.cont [7/16] %v15, 128
    %48 = vxpose.xlu0.b32.cont [8/16] %v16, 128
    %49 = vxpose.xlu0.b32.cont [9/16] %v17, 128
    %50 = vxpose.xlu0.b32.cont [10/16] %v18, 128
    %51 = vxpose.xlu0.b32.cont [11/16] %v19, 128
    %52 = vxpose.xlu0.b32.cont [12/16] %v20, 128
    %53 = vxpose.xlu0.b32.cont [13/16] %v21, 128
    %54 = vxpose.xlu0.b32.cont [14/16] %v22, 128
    %55 = vxpose.xlu0.b32.cont [15/16] %v23, 128
    %56 = vxpose.xlu0.b32.end [16/16] %v24, 128
    %v57 = vpop.trf.xlu0
    %v58 = vpop.trf.xlu0
    %v59 = vpop.trf.xlu0
    %v60 = vpop.trf.xlu0
    %v61 = vpop.trf.xlu0
    %v62 = vpop.trf.xlu0
    %v63 = vpop.trf.xlu0
    %v64 = vpop.trf.xlu0
    %v65 = vpop.trf.xlu0
    %v66 = vpop.trf.xlu0
    %v67 = vpop.trf.xlu0
    %v68 = vpop.trf.xlu0
    %v69 = vpop.trf.xlu0
    %v70 = vpop.trf.xlu0
    %v71 = vpop.trf.xlu0
    %v72 = vpop.trf.xlu0
    %73 = vxpose.xlu0.b32.start [1/16] %v25, 128
    %74 = vxpose.xlu0.b32.cont [2/16] %v26, 128
    %75 = vxpose.xlu0.b32.cont [3/16] %v27, 128
    %76 = vxpose.xlu0.b32.cont [4/16] %v28, 128
    %77 = vxpose.xlu0.b32.cont [5/16] %v29, 128
    %78 = vxpose.xlu0.b32.cont [6/16] %v30, 128
    %79 = vxpose.xlu0.b32.cont [7/16] %v31, 128
    %80 = vxpose.xlu0.b32.cont [8/16] %v32, 128
    %81 = vxpose.xlu0.b32.cont [9/16] %v33, 128
    %82 = vxpose.xlu0.b32.cont [10/16] %v34, 128
    %83 = vxpose.xlu0.b32.cont [11/16] %v35, 128
    %84 = vxpose.xlu0.b32.cont [12/16] %v36, 128
    %85 = vxpose.xlu0.b32.cont [13/16] %v37, 128
    %86 = vxpose.xlu0.b32.cont [14/16] %v38, 128
    %87 = vxpose.xlu0.b32.cont [15/16] %v39, 128
    %88 = vxpose.xlu0.b32.end [16/16] %v40, 128
    %v89 = vpop.trf.xlu0
    %v90 = vpop.trf.xlu0
    %v91 = vpop.trf.xlu0
    %v92 = vpop.trf.xlu0
    %v93 = vpop.trf.xlu0
    %v94 = vpop.trf.xlu0
    %v95 = vpop.trf.xlu0
    %v96 = vpop.trf.xlu0
    %v97 = vpop.trf.xlu0
    %v98 = vpop.trf.xlu0
    %v99 = vpop.trf.xlu0
    %v100 = vpop.trf.xlu0
    %v101 = vpop.trf.xlu0
    %v102 = vpop.trf.xlu0
    %v103 = vpop.trf.xlu0
    %v104 = vpop.trf.xlu0
    %v107 = vcombine.low %v57, %v89
    %109 = vst [vmem:[#allocation2] sm:$0xff] %v107
    %s110 = scalar_lea.vmem %s0, 256
    %v111 = vld [vmem:[%s110] sm:$0xff]
    %v112 = vld [vmem:[%s110 + $0x8] sm:$0xff]
    %v113 = vld [vmem:[%s110 + $0x10] sm:$0xff]
    %v114 = vld [vmem:[%s110 + $0x18] sm:$0xff]
    %v115 = vld [vmem:[%s110 + $0x20] sm:$0xff]
    %v116 = vld [vmem:[%s110 + $0x28] sm:$0xff]
    %v117 = vld [vmem:[%s110 + $0x30] sm:$0xff]
    %v118 = vld [vmem:[%s110 + $0x38] sm:$0xff]
    %v119 = vld [vmem:[%s110 + $0x40] sm:$0xff]
    %v120 = vld [vmem:[%s110 + $0x48] sm:$0xff]
    %v121 = vld [vmem:[%s110 + $0x50] sm:$0xff]
    %v122 = vld [vmem:[%s110 + $0x58] sm:$0xff]
    %v123 = vld [vmem:[%s110 + $0x60] sm:$0xff]
    %v124 = vld [vmem:[%s110 + $0x68] sm:$0xff]
    %v125 = vld [vmem:[%s110 + $0x70] sm:$0xff]
    %v126 = vld [vmem:[%s110 + $0x78] sm:$0xff]
    %v127 = vld [vmem:[%s110 + $0x80] sm:$0xff]
    %v128 = vld [vmem:[%s110 + $0x88] sm:$0xff]
    %v129 = vld [vmem:[%s110 + $0x90] sm:$0xff]
    %v130 = vld [vmem:[%s110 + $0x98] sm:$0xff]
    %v131 = vld [vmem:[%s110 + $0xa0] sm:$0xff]
    %v132 = vld [vmem:[%s110 + $0xa8] sm:$0xff]
    %v133 = vld [vmem:[%s110 + $0xb0] sm:$0xff]
    %v134 = vld [vmem:[%s110 + $0xb8] sm:$0xff]
    %v135 = vld [vmem:[%s110 + $0xc0] sm:$0xff]
    %v136 = vld [vmem:[%s110 + $0xc8] sm:$0xff]
    %v137 = vld [vmem:[%s110 + $0xd0] sm:$0xff]
    %v138 = vld [vmem:[%s110 + $0xd8] sm:$0xff]
    %v139 = vld [vmem:[%s110 + $0xe0] sm:$0xff]
    %v140 = vld [vmem:[%s110 + $0xe8] sm:$0xff]
    %v141 = vld [vmem:[%s110 + $0xf0] sm:$0xff]
    %v142 = vld [vmem:[%s110 + $0xf8] sm:$0xff]
    %143 = vxpose.xlu0.b32.start [1/16] %v111, 128
    %144 = vxpose.xlu0.b32.cont [2/16] %v112, 128
    %145 = vxpose.xlu0.b32.cont [3/16] %v113, 128
    %146 = vxpose.xlu0.b32.cont [4/16] %v114, 128
    %147 = vxpose.xlu0.b32.cont [5/16] %v115, 128
    %148 = vxpose.xlu0.b32.cont [6/16] %v116, 128
    %149 = vxpose.xlu0.b32.cont [7/16] %v117, 128
    %150 = vxpose.xlu0.b32.cont [8/16] %v118, 128
    %151 = vxpose.xlu0.b32.cont [9/16] %v119, 128
    %152 = vxpose.xlu0.b32.cont [10/16] %v120, 128
    %153 = vxpose.xlu0.b32.cont [11/16] %v121, 128
    %154 = vxpose.xlu0.b32.cont [12/16] %v122, 128
    %155 = vxpose.xlu0.b32.cont [13/16] %v123, 128
    %156 = vxpose.xlu0.b32.cont [14/16] %v124, 128
    %157 = vxpose.xlu0.b32.cont [15/16] %v125, 128
    %158 = vxpose.xlu0.b32.end [16/16] %v126, 128
    %v159 = vpop.trf.xlu0
    %v160 = vpop.trf.xlu0
    %v161 = vpop.trf.xlu0
    %v162 = vpop.trf.xlu0
    %v163 = vpop.trf.xlu0
    %v164 = vpop.trf.xlu0
    %v165 = vpop.trf.xlu0
    %v166 = vpop.trf.xlu0
    %v167 = vpop.trf.xlu0
    %v168 = vpop.trf.xlu0
    %v169 = vpop.trf.xlu0
    %v170 = vpop.trf.xlu0
    %v171 = vpop.trf.xlu0
    %v172 = vpop.trf.xlu0
    %v173 = vpop.trf.xlu0
    %v174 = vpop.trf.xlu0
    %175 = vxpose.xlu0.b32.start [1/16] %v127, 128
    %176 = vxpose.xlu0.b32.cont [2/16] %v128, 128
    %177 = vxpose.xlu0.b32.cont [3/16] %v129, 128
    %178 = vxpose.xlu0.b32.cont [4/16] %v130, 128
    %179 = vxpose.xlu0.b32.cont [5/16] %v131, 128
    %180 = vxpose.xlu0.b32.cont [6/16] %v132, 128
    %181 = vxpose.xlu0.b32.cont [7/16] %v133, 128
    %182 = vxpose.xlu0.b32.cont [8/16] %v134, 128
    %183 = vxpose.xlu0.b32.cont [9/16] %v135, 128
    %184 = vxpose.xlu0.b32.cont [10/16] %v136, 128
    %185 = vxpose.xlu0.b32.cont [11/16] %v137, 128
    %186 = vxpose.xlu0.b32.cont [12/16] %v138, 128
    %187 = vxpose.xlu0.b32.cont [13/16] %v139, 128
    %188 = vxpose.xlu0.b32.cont [14/16] %v140, 128
    %189 = vxpose.xlu0.b32.cont [15/16] %v141, 128
    %190 = vxpose.xlu0.b32.end [16/16] %v142, 128
    %v191 = vpop.trf.xlu0
    %v192 = vpop.trf.xlu0
    %v193 = vpop.trf.xlu0
    %v194 = vpop.trf.xlu0
    %v195 = vpop.trf.xlu0
    %v196 = vpop.trf.xlu0
    %v197 = vpop.trf.xlu0
    %v198 = vpop.trf.xlu0
    %v199 = vpop.trf.xlu0
    %v200 = vpop.trf.xlu0
    %v201 = vpop.trf.xlu0
    %v202 = vpop.trf.xlu0
    %v203 = vpop.trf.xlu0
    %v204 = vpop.trf.xlu0
    %v205 = vpop.trf.xlu0
    %v206 = vpop.trf.xlu0
    %v209 = vcombine.low %v159, %v191
    %s211 = scalar_lea.vmem [#allocation2], 8
    %212 = vst [vmem:[%s211] sm:$0xff] %v209
    // Predicated region
    $region6: #{tpu_custom_call.1} parent=1 // pred_check
      _
    $region7: #{tpu_custom_call.1} parent=1 // pred_check_branch
      %214 = sbr.rel (0) target = $region9
    $region8: #{tpu_custom_call.1} parent=1 // pred_region
      %s216 = ssub.s32 256, 256
      %217 = vsyncadd [#allocation3], %s216
      %s218 = sshll.u32 [#allocation2], 4
      %s219 = int_to_ptr.vmem [resolvable:$true] %s218
      %224 = dma.vmem_to_hbm [thread:$0]  %s219, 256, %s1, [#allocation3], 128, 128, 8
    $region9: #{tpu_custom_call.1} parent=1 // pred_fallthru
      _
    // Predicated region
    $region10: #{tpu_custom_call.1} parent=1 // pred_check
      _
    $region11: #{tpu_custom_call.1} parent=1 // pred_check_branch
      %226 = sbr.rel (0) target = $region13
    $region12: #{tpu_custom_call.1} parent=1 // pred_region
      %227 = dma.done [#allocation3], 256
    $region13: #{tpu_custom_call.1} parent=1 // pred_fallthru
      _
    %228 = vsyncpa [#allocation3], 1

</llo_original>
